<compile_context>
chip_gen: v7x
topology: tpu7x:2x2x1
jax: 0.10.0
libtpu: 0.0.40
codegen_flags: <defaults>
</compile_context>

<pallas_src>
import math
from functools import partial

import jax
import jax.numpy as jnp
from jax.experimental import pallas as pl
from jax.experimental.pallas import tpu as pltpu


# ----------------------------------------------------------------------------
# Generation-aware scoped-VMEM limit
# ----------------------------------------------------------------------------
_VMEM_LIMIT_CACHE = None


def _vmem_limit_bytes():
    """~3/4 of physical VMEM (≈96 MiB on v5e/v6e, ≈48 MiB on v7x), capped."""
    global _VMEM_LIMIT_CACHE
    if _VMEM_LIMIT_CACHE is None:
        cap = 64 * 1024 * 1024              # conservative fallback (v7x physical)
        try:
            info = pltpu.get_tpu_info()
            cap = int(getattr(info, "vmem_capacity_bytes", cap))
        except Exception:
            pass
        _VMEM_LIMIT_CACHE = min((cap * 3) // 4, 100 * 1024 * 1024)
    return _VMEM_LIMIT_CACHE


def _pick_tile(n, candidates):
    return next((t for t in candidates if n % t == 0), None)


# ----------------------------------------------------------------------------
# Tiled linear projection kernel (row + column tiled GEMM)
# ----------------------------------------------------------------------------
def _linear_kernel(x_ref, w_ref, b_ref, o_ref):
    # x: (tm, K), w: (K, tn), b: (1, tn) -> o: (tm, tn); f32 accumulate on MXU.
    o_ref[...] = (
        jnp.dot(x_ref[...], w_ref[...], preferred_element_type=jnp.float32)
        + b_ref[...]
    ).astype(o_ref.dtype)


def linear(x, w, b):
    """y = x @ w + b.  w is (in, out) (already transposed from torch layout)."""
    M, K = x.shape
    N = w.shape[1]

    # Row tiling: prefer large tiles; pad a big non-divisible M instead of
    # collapsing to a single un-pipelined block.
    tm = _pick_tile(M, (512, 256, 128))
    m_pad = 0
    if tm is None:
        if M > 256:
            tm = 256
            m_pad = (-M) % tm
        else:
            tm = M                          # small input: single full-extent block
    if m_pad:
        x = jnp.pad(x, ((0, m_pad), (0, 0)))
    Mp = M + m_pad

    # Column tiling: weight block is (K, tn) rather than the full (K, N) matrix,
    # so large d_model stays within VMEM and output stores stay unmasked.
    tn = _pick_tile(N, (512, 256, 128)) or N

    out = pl.pallas_call(
        _linear_kernel,
        out_shape=jax.ShapeDtypeStruct((Mp, N), x.dtype),
        grid=(Mp // tm, N // tn),
        in_specs=[
            pl.BlockSpec((tm, K), lambda i, j: (i, 0)),   # stream activation rows
            pl.BlockSpec((K, tn), lambda i, j: (0, j)),   # stream weight columns
            pl.BlockSpec((1, tn), lambda i, j: (0, j)),
        ],
        out_specs=pl.BlockSpec((tm, tn), lambda i, j: (i, j)),
        compiler_params=pltpu.CompilerParams(
            dimension_semantics=("parallel", "parallel"),
            vmem_limit_bytes=_vmem_limit_bytes(),
        ),
    )(x, w, b.reshape(1, N))
    return out[:M] if m_pad else out


# ----------------------------------------------------------------------------
# Flash-style FullAttention kernel (online softmax over S tiles)
# ----------------------------------------------------------------------------
def _flash_attention_kernel(q_ref, k_ref, v_ref, o_ref, m_ref, l_ref, acc_ref,
                            *, n_heads, d_qk, d_v, mix):
    # q_ref: (1, Lt, H*E)   k_ref: (1, St, H*E)   v_ref: (1, St, H*D)
    # o_ref: (1, Lt, H*D) [mix=False]  or  (1, H, Lt, D) [mix=True]
    # scratch (f32, persistent across the S axis):
    #   m_ref:  (Lt, H)    running max per head
    #   l_ref:  (Lt, H*D)  running denominator, broadcast across each head's D lanes
    #   acc_ref:(Lt, H*D)  running numerator
    s_idx = pl.program_id(2)

    @pl.when(s_idx == 0)
    def _init():
        m_ref[...] = jnp.full(m_ref.shape, -jnp.inf, jnp.float32)
        l_ref[...] = jnp.zeros(l_ref.shape, jnp.float32)
        acc_ref[...] = jnp.zeros(acc_ref.shape, jnp.float32)

    H, E, D = n_heads, d_qk, d_v
    for h in range(H):                               # static unroll over heads
        qh = q_ref[0, :, h * E:(h + 1) * E]          # (Lt, E), input dtype
        kh = k_ref[0, :, h * E:(h + 1) * E]          # (St, E)
        vh = v_ref[0, :, h * D:(h + 1) * D]          # (St, D)

        # scores = qh @ kh^T (contract last dims, no materialized transpose);
        # operands stay in the input dtype, accumulation is f32 on the MXU.
        s = jax.lax.dot_general(qh, kh, (((1,), (1,)), ((), ())),
                                preferred_element_type=jnp.float32)   # (Lt, St)

        m_prev = m_ref[:, h:h + 1]                                    # (Lt, 1)
        m_new = jnp.maximum(m_prev, jnp.max(s, axis=-1, keepdims=True))
        alpha = jnp.exp(m_prev - m_new)                               # (Lt, 1)
        p = jnp.exp(s - m_new)                                        # (Lt, St) f32

        m_ref[:, h:h + 1] = m_new
        # denominator stored broadcast across this head's D lanes so the final
        # normalization is one dense vector op over the whole (Lt, H*D) slab.
        l_ref[:, h * D:(h + 1) * D] = (
            alpha * l_ref[:, h * D:(h + 1) * D]
            + jnp.sum(p, axis=-1, keepdims=True))
        pv = jax.lax.dot_general(p.astype(vh.dtype), vh, (((1,), (0,)), ((), ())),
                                 preferred_element_type=jnp.float32)  # (Lt, D)
        acc_ref[:, h * D:(h + 1) * D] = alpha * acc_ref[:, h * D:(h + 1) * D] + pv

    @pl.when(s_idx == pl.num_programs(2) - 1)
    def _finalize():
        if mix:
            # torch: out.transpose(2,1).contiguous() -> emit (H, Lt, D) blocks;
            # the (B,H,L,D)->(B,L,H*D) view is a free flat reshape in the wrapper.
            for h in range(H):
                o_ref[0, h] = (acc_ref[:, h * D:(h + 1) * D]
                               / l_ref[:, h * D:(h + 1) * D]).astype(o_ref.dtype)
        else:
            # single lane-dense (Lt, H*D) store; exact divide (not approx recip).
            o_ref[0] = (acc_ref[...] / l_ref[...]).astype(o_ref.dtype)


def full_attention(q, k, v, *, n_heads, mix=False):
    """Informer FullAttention (mask_flag=False, output_attention=False).

    q: (B, L, H*E), k: (B, S, H*E), v: (B, S, H*D), all lane-dense.
    Returns (B, L, H*D) if mix=False, else (B, H, L, D).
    The 1/sqrt(E) score scale must already be folded into q
    (see fold_attention_scale)."""
    B, L, HE = q.shape
    S = k.shape[1]
    HD = v.shape[2]
    H = n_heads
    E = HE // H
    D = HD // H

    # Flash tiling: L tile (parallel, feeds both TCs on v7x) x S tile (arbitrary).
    Lt = _pick_tile(L, (256, 128)) or L
    St = _pick_tile(S, (512, 256, 128)) or S

    if mix:
        out_shape = jax.ShapeDtypeStruct((B, H, L, D), q.dtype)
        out_spec = pl.BlockSpec((1, H, Lt, D), lambda b, i, j: (b, 0, i, 0))
    else:
        out_shape = jax.ShapeDtypeStruct((B, L, HD), q.dtype)
        out_spec = pl.BlockSpec((1, Lt, HD), lambda b, i, j: (b, i, 0))

    kernel = partial(_flash_attention_kernel, n_heads=H, d_qk=E, d_v=D, mix=mix)
    return pl.pallas_call(
        kernel,
        out_shape=out_shape,
        grid=(B, L // Lt, S // St),
        in_specs=[
            pl.BlockSpec((1, Lt, HE), lambda b, i, j: (b, i, 0)),
            pl.BlockSpec((1, St, HE), lambda b, i, j: (b, j, 0)),
            pl.BlockSpec((1, St, HD), lambda b, i, j: (b, j, 0)),
        ],
        out_specs=out_spec,
        scratch_shapes=[
            pltpu.VMEM((Lt, H), jnp.float32),    # running max
            pltpu.VMEM((Lt, HD), jnp.float32),   # running denom (broadcast over D)
            pltpu.VMEM((Lt, HD), jnp.float32),   # running numerator
        ],
        compiler_params=pltpu.CompilerParams(
            dimension_semantics=("parallel", "parallel", "arbitrary"),
            vmem_limit_bytes=_vmem_limit_bytes(),
        ),
    )(q, k, v)


# ----------------------------------------------------------------------------
# AttentionLayer parameters & wrapper (only free contiguous reshapes outside)
# ----------------------------------------------------------------------------
def init_attention_layer_params(key, d_model, n_heads, d_keys=None, d_values=None):
    """torch nn.Linear-style init: U(-1/sqrt(fan_in), 1/sqrt(fan_in))."""
    d_keys = d_keys or d_model // n_heads
    d_values = d_values or d_model // n_heads
    ks = jax.random.split(key, 8)

    def _lin(kw, kb, fan_in, fan_out):
        bound = 1.0 / math.sqrt(fan_in)
        w = jax.random.uniform(kw, (fan_in, fan_out), jnp.float32, -bound, bound)
        b = jax.random.uniform(kb, (fan_out,), jnp.float32, -bound, bound)
        return w, b

    wq, bq = _lin(ks[0], ks[1], d_model, d_keys * n_heads)
    wk, bk = _lin(ks[2], ks[3], d_model, d_keys * n_heads)
    wv, bv = _lin(ks[4], ks[5], d_model, d_values * n_heads)   # unused in forward
    wo, bo = _lin(ks[6], ks[7], d_values * n_heads, d_model)
    return dict(wq=wq, bq=bq, wk=wk, bk=bk, wv=wv, bv=bv, wo=wo, bo=bo)


def fold_attention_scale(params, n_heads):
    """One-time prep: fold FullAttention's 1/sqrt(d_k) score scale into the
    query projection so the attention kernel does no per-step scaling."""
    d_k = params["wq"].shape[1] // n_heads
    s = 1.0 / math.sqrt(d_k)
    out = dict(params)
    out["wq"] = params["wq"] * s
    out["bq"] = params["bq"] * s
    return out


def attention_layer_forward(params, queries, keys, values, attn_mask=None,
                            n_heads=4, mix=False):
    """AttentionLayer.forward.  `params` must be pre-processed with
    fold_attention_scale.  Returns (output, None)."""
    B, L, d_model = queries.shape
    _, S, _ = keys.shape
    H = n_heads

    q = linear(queries.reshape(B * L, d_model), params["wq"], params["bq"])
    k = linear(keys.reshape(B * S, d_model), params["wk"], params["bk"])

    HD = values.shape[-1]              # values passed raw (matches reference forward)
    D = HD // H

    # Only contiguous (free) reshapes here; head split/merge happens on the lane
    # dimension inside the kernel, so no XLA transposes around the attention.
    q3 = q.reshape(B, L, -1)
    k3 = k.reshape(B, S, -1)

    out = full_attention(q3, k3, values, n_heads=H, mix=mix)
    if mix:
        # (B, H, L, D) -> (B, L, H*D): flat reinterpretation, equals torch's
        # out.transpose(2, 1).contiguous().view(B, L, -1)
        out = out.reshape(B, L, H * D)

    y = linear(out.reshape(B * L, H * D), params["wo"], params["bo"])
    return y.reshape(B, L, d_model), None   # output_attention=False -> attn is None


# ----------------------------------------------------------------------------
# Pure-JAX reference (takes the RAW, un-folded params)
# ----------------------------------------------------------------------------
def _reference_forward(params, queries, keys, values, n_heads, mix):
    B, L, d_model = queries.shape
    S = keys.shape[1]
    H = n_heads
    hi = jax.lax.Precision.HIGHEST
    q = (jnp.einsum("bld,de->ble", queries, params["wq"], precision=hi)
         + params["bq"]).reshape(B, L, H, -1)
    k = (jnp.einsum("bsd,de->bse", keys, params["wk"], precision=hi)
         + params["bk"]).reshape(B, S, H, -1)
    E = q.shape[-1]
    D = values.shape[-1] // H
    v = values.reshape(B, S, H, D)
    scores = jnp.einsum("blhe,bshe->bhls", q, k, precision=hi) / math.sqrt(E)
    a = jax.nn.softmax(scores, axis=-1)
    out = jnp.einsum("bhls,bshd->blhd", a, v, precision=hi)
    if mix:
        out = jnp.transpose(out, (0, 2, 1, 3))
    out = out.reshape(B, L, H * D)
    return jnp.einsum("blf,fd->bld", out, params["wo"], precision=hi) + params["bo"]


# ----------------------------------------------------------------------------
if __name__ == "__main__":
    B, L, S, d_model, n_heads = 2, 8, 8, 32, 4

    key = jax.random.PRNGKey(0)
    kq, kk, kv, kp = jax.random.split(key, 4)
    queries = jax.random.normal(kq, (B, L, d_model), jnp.float32)
    keys_in = jax.random.normal(kk, (B, S, d_model), jnp.float32)
    values = jax.random.normal(kv, (B, S, d_model), jnp.float32)

    raw_params = init_attention_layer_params(kp, d_model, n_heads)
    params = fold_attention_scale(raw_params, n_heads)

    for mix in (False, True):
        out, attn = attention_layer_forward(params, queries, keys_in, values,
                                            attn_mask=None, n_heads=n_heads, mix=mix)
        out = jax.block_until_ready(out)
        assert out.shape == (B, L, d_model)
        assert attn is None
        ref = _reference_forward(raw_params, queries, keys_in, values, n_heads, mix)
        err = float(jnp.max(jnp.abs(out - ref)))
        assert err < 5e-2, f"mismatch vs reference (mix={mix}): max abs err {err}"

    print("KERNEL_OK")
</pallas_src>

<mosaic_0001>
module attributes {stable_mosaic.version = 11 : i64} {
  func.func @_linear_kernel(%arg0: i32, %arg1: i32, %arg2: memref<16x32xf32, #tpu.memory_space<vmem>>, %arg3: memref<32x32xf32, #tpu.memory_space<vmem>>, %arg4: memref<1x32xf32, #tpu.memory_space<vmem>>, %arg5: memref<16x32xf32, #tpu.memory_space<vmem>>) attributes {dimension_semantics = [#tpu.dimension_semantics<parallel>, #tpu.dimension_semantics<parallel>], iteration_bounds = array<i64: 1, 1>, scalar_prefetch = 0 : i64, scratch_operands = 0 : i64, tpu.core_type = #tpu.core_type<tc>, window_params = [{transform_indices = @transform_0, window_bounds = array<i64: 16, 32>}, {transform_indices = @transform_1, window_bounds = array<i64: 32, 32>}, {transform_indices = @transform_2, window_bounds = array<i64: 1, 32>}, {transform_indices = @transform_3, window_bounds = array<i64: 16, 32>}]} {
    %c0 = arith.constant 0 : index
    %c0_0 = arith.constant 0 : index
    %0 = vector.load %arg2[%c0, %c0_0] : memref<16x32xf32, #tpu.memory_space<vmem>>, vector<16x32xf32>
    %c0_1 = arith.constant 0 : index
    %c0_2 = arith.constant 0 : index
    %1 = vector.load %arg3[%c0_1, %c0_2] : memref<32x32xf32, #tpu.memory_space<vmem>>, vector<32x32xf32>
    %cst = arith.constant dense<0.000000e+00> : vector<16x32xf32>
    %2 = tpu.matmul %0, %1, %cst {dimension_numbers = #tpu.dot_dimension_numbers<[1], [0], [0], [1], [0, 0, 1, 1], [], []>} : vector<16x32xf32>, vector<32x32xf32>, vector<16x32xf32> -> vector<16x32xf32>
    %c0_3 = arith.constant 0 : index
    %c0_4 = arith.constant 0 : index
    %3 = vector.load %arg4[%c0_3, %c0_4] : memref<1x32xf32, #tpu.memory_space<vmem>>, vector<1x32xf32>
    %4 = vector.broadcast %3 : vector<1x32xf32> to vector<16x32xf32>
    %5 = arith.addf %2, %4 : vector<16x32xf32>
    %c0_5 = arith.constant 0 : index
    %c0_6 = arith.constant 0 : index
    %6 = vector.load %arg5[%c0_5, %c0_6] : memref<16x32xf32, #tpu.memory_space<vmem>>, vector<16x32xf32>
    tpu.vector_store %arg5[%c0_5, %c0_6], %5 {strides = array<i32>} : memref<16x32xf32, #tpu.memory_space<vmem>>, vector<16x32xf32>,
    return
  }
  func.func @transform_0(%arg0: i32, %arg1: i32) -> (i32, i32) {
    %c0_i32 = arith.constant 0 : i32
    %c0_i32_0 = arith.constant 0 : i32
    return %arg0, %c0_i32 : i32, i32
  }
  func.func @transform_1(%arg0: i32, %arg1: i32) -> (i32, i32) {
    %c0_i32 = arith.constant 0 : i32
    %c0_i32_0 = arith.constant 0 : i32
    return %c0_i32, %arg1 : i32, i32
  }
  func.func @transform_2(%arg0: i32, %arg1: i32) -> (i32, i32) {
    %c0_i32 = arith.constant 0 : i32
    %c0_i32_0 = arith.constant 0 : i32
    return %c0_i32, %arg1 : i32, i32
  }
  func.func @transform_3(%arg0: i32, %arg1: i32) -> (i32, i32) {
    %c0_i32 = arith.constant 0 : i32
    return %arg0, %arg1 : i32, i32
  }
}

</mosaic_0001>

<llo_original>
// kernel: tpu_custom_call.1
$region0: #{tpu_custom_call.1}
  #allocation0 [shape = 'u32[]', space=smem, size = 0x4, offset = 0x4, fixed_abs, tag = 'smem constant byte address 0x4 - core index']
  #allocation1 [shape = 'u32[144,128]{1,0:T(1,128)}', space=vmem, size = 0x12000, scoped, tag = 'internal scratch']
  %s0 = inlined_call_operand.hbm [shape: f32[16,32], index: 0, kind: input, shape index: {}]
  %s1 = inlined_call_operand.hbm [shape: f32[32,32], index: 1, kind: input, shape index: {}]
  %s2 = inlined_call_operand.vmem [shape: f32[1,32], index: 2, kind: input, shape index: {}]
  %s3 = inlined_call_operand.hbm [shape: f32[16,32], index: 3, kind: output, shape index: {}]
  %s4 = sld [smem:[#allocation0]]
  $region30: #{tpu_custom_call.1} parent=0
    _
  %s6 = ssub.s32 1, %s4
  %s7 = scalar_select 0, %s6, %s4
  $region1: #{tpu_custom_call.1} parent=0
    #allocation2 [shape = 'u8[8192]{0}', space=vmem, size = 0x2000, scoped, tag = 'input window, operand 0, single buffered']
    #allocation3 [shape = 's32[1]{0}', space=sflag, size = 0x4, scoped, tag = 'scoped memory for tpu_custom_call.1']
    #allocation4 [shape = 's32[1]{0}', space=sflag, size = 0x4, scoped, tag = 'scoped memory for tpu_custom_call.1']
    #allocation5 [shape = 'u8[16384]{0}', space=vmem, size = 0x4000, scoped, tag = 'input window, operand 1, single buffered']
    #allocation6 [shape = 's32[1]{0}', space=sflag, size = 0x4, scoped, tag = 'scoped memory for tpu_custom_call.1']
    #allocation7 [shape = 'u8[8192]{0}', space=vmem, size = 0x2000, scoped, tag = 'output window, operand 0, single buffered']
    %8 = vsyncpa [#allocation3], 0
    %9 = vsyncpa [#allocation6], 0
    %10 = vsyncpa [#allocation4], 0
    // Predicated region
    $region2: #{tpu_custom_call.1} parent=1 // pred_check
      _
    $region3: #{tpu_custom_call.1} parent=1 // pred_check_branch
      %12 = sbr.rel (0) target = $region5
    $region4: #{tpu_custom_call.1} parent=1 // pred_region
      %s14 = ssub.s32 256, 256
      %15 = vsyncadd [#allocation3], %s14
      %s16 = sshll.u32 [#allocation2], 4
      %s17 = int_to_ptr.vmem [resolvable:$true] %s16
      %22 = dma.hbm_to_vmem [thread:$0]  %s0, 256, %s17, [#allocation3], 128, 128, 8
    $region5: #{tpu_custom_call.1} parent=1 // pred_fallthru
      _
    // Predicated region
    $region6: #{tpu_custom_call.1} parent=1 // pred_check
      _
    $region7: #{tpu_custom_call.1} parent=1 // pred_check_branch
      %24 = sbr.rel (0) target = $region9
    $region8: #{tpu_custom_call.1} parent=1 // pred_region
      %s26 = ssub.s32 512, 512
      %27 = vsyncadd [#allocation6], %s26
      %s28 = sshll.u32 [#allocation5], 4
      %s29 = int_to_ptr.vmem [resolvable:$true] %s28
      %34 = dma.hbm_to_vmem [thread:$0]  %s1, 512, %s29, [#allocation6], 128, 128, 8
    $region9: #{tpu_custom_call.1} parent=1 // pred_fallthru
      _
    // Predicated region
    $region10: #{tpu_custom_call.1} parent=1 // pred_check
      _
    $region11: #{tpu_custom_call.1} parent=1 // pred_check_branch
      %36 = sbr.rel (0) target = $region13
    $region12: #{tpu_custom_call.1} parent=1 // pred_region
      _
    $region13: #{tpu_custom_call.1} parent=1 // pred_fallthru
      _
    // Predicated region
    $region14: #{tpu_custom_call.1} parent=1 // pred_check
      _
    $region15: #{tpu_custom_call.1} parent=1 // pred_check_branch
      %38 = sbr.rel (0) target = $region17
    $region16: #{tpu_custom_call.1} parent=1 // pred_region
      %39 = dma.done [#allocation3], 256
    $region17: #{tpu_custom_call.1} parent=1 // pred_fallthru
      _
    // Predicated region
    $region18: #{tpu_custom_call.1} parent=1 // pred_check
      _
    $region19: #{tpu_custom_call.1} parent=1 // pred_check_branch
      %41 = sbr.rel (0) target = $region21
    $region20: #{tpu_custom_call.1} parent=1 // pred_region
      %42 = dma.done [#allocation6], 512
    $region21: #{tpu_custom_call.1} parent=1 // pred_fallthru
      _
    %v43 = vld [vmem:[#allocation2] sm:$0xff]
    %v44 = vld [vmem:[#allocation2 + $0x8] sm:$0xff]
    %v45 = vld [vmem:[#allocation5] sm:$0xff]
    %v46 = vld [vmem:[#allocation5 + $0x8] sm:$0xff]
    %v47 = vld [vmem:[#allocation5 + $0x10] sm:$0xff]
    %v48 = vld [vmem:[#allocation5 + $0x18] sm:$0xff]
    %v49 = vld [vmem:[%s2] sm:$0x1]
    %v51 = vlaneseq
    %v52 = vshrl.u32 %v51, 7
    %v53 = vsub.s32 0, %v52
    %v54 = vrot.slane %v49, %v53
    %vm56 = vcmask 261120
    %v58 = vsel %vm56, %v43, 0
    %v61 = vsel %vm56, %v44, 0
    %63 = vmatprep.subr.mxu0 0.0
    %64 = vmatpush1.msra.mxu0 %v45
    %65 = vmatprep.subr.mxu0 0.0
    %66 = vmatpush1.msra.mxu0 %v46
    %67 = vmatprep.subr.mxu0 0.0
    %68 = vmatpush1.msra.mxu0 %v47
    %69 = vmatprep.subr.mxu0 0.0
    %70 = vmatpush1.msra.mxu0 %v48
    %71 = vmatprep.subr.mxu0 0.0
    %72 = vmatpush1.msra.mxu0 0.0
    %73 = vmatprep.subr.mxu0 0.0
    %74 = vmatpush1.msra.mxu0 0.0
    %75 = vmatprep.subr.mxu0 0.0
    %76 = vmatpush1.msra.mxu0 0.0
    %77 = vmatprep.subr.mxu0 0.0
    %78 = vmatpush1.msra.mxu0 0.0
    %79 = vmatprep.subr.mxu0 0.0
    %80 = vmatpush1.msra.mxu0 0.0
    %81 = vmatprep.subr.mxu0 0.0
    %82 = vmatpush1.msra.mxu0 0.0
    %83 = vmatprep.subr.mxu0 0.0
    %84 = vmatpush1.msra.mxu0 0.0
    %85 = vmatprep.subr.mxu0 0.0
    %86 = vmatpush1.msra.mxu0 0.0
    %87 = vmatprep.subr.mxu0 0.0
    %88 = vmatpush1.msra.mxu0 0.0
    %89 = vmatprep.subr.mxu0 0.0
    %90 = vmatpush1.msra.mxu0 0.0
    %91 = vmatprep.subr.mxu0 0.0
    %92 = vmatpush1.msra.mxu0 0.0
    %93 = vmatprep.subr.mxu0 0.0
    %94 = vmatpush1.msra.mxu0 0.0
    %95 = vmatprep.subr.mxu0 0.0
    %96 = vmatpush1.msra.mxu0 0.0
    %97 = vmatprep.subr.mxu0 0.0
    %98 = vmatpush1.msra.mxu0 0.0
    %99 = vmatprep.subr.mxu0 0.0
    %100 = vmatpush1.msra.mxu0 0.0
    %101 = vmatprep.subr.mxu0 0.0
    %102 = vmatpush1.msra.mxu0 0.0
    %103 = vmatprep.subr.mxu0 0.0
    %104 = vmatpush1.msra.mxu0 0.0
    %105 = vmatprep.subr.mxu0 0.0
    %106 = vmatpush1.msra.mxu0 0.0
    %107 = vmatprep.subr.mxu0 0.0
    %108 = vmatpush1.msra.mxu0 0.0
    %109 = vmatprep.subr.mxu0 0.0
    %110 = vmatpush1.msra.mxu0 0.0
    %111 = vmatprep.subr.mxu0 0.0
    %112 = vmatpush1.msra.mxu0 0.0
    %113 = vmatprep.subr.mxu0 0.0
    %114 = vmatpush1.msra.mxu0 0.0
    %115 = vmatprep.subr.mxu0 0.0
    %116 = vmatpush1.msra.mxu0 0.0
    %117 = vmatprep.subr.mxu0 0.0
    %118 = vmatpush1.msra.mxu0 0.0
    %119 = vmatprep.subr.mxu0 0.0
    %120 = vmatpush1.msra.mxu0 0.0
    %121 = vmatprep.subr.mxu0 0.0
    %122 = vmatpush1.msra.mxu0 0.0
    %123 = vmatprep.subr.mxu0 0.0
    %124 = vmatpush1.msra.mxu0 0.0
    %125 = vmatprep.subr.mxu0 0.0
    %126 = vmatpush1.msra.mxu0 0.0
    %127 = vmatprep.mubr.f32.mxu0 0.0
    %128 = vmatmul.mubr.f32.gmra.mrb[0].mxu0 %v58
    %v129 = vpop.f32.mrb[0].mxu0
    %v130 = vadd.f32 %v54, %v129
    %v131 = vpop.f32.mrb[0].mxu0
    %132 = vmatprep.mubr.f32.mxu0 0.0
    %133 = vmatmul.mubr.f32.gmra.mrb[0].mxu0 %v61
    %v134 = vpop.f32.mrb[0].mxu0
    %v135 = vadd.f32 %v54, %v134
    %v136 = vpop.f32.mrb[0].mxu0
    %137 = vdwg.mxu0
    %138 = vst.msk [vmem:[#allocation7] sm:$0xff] %vm56, %v130
    %139 = vst.msk [vmem:[#allocation7 + $0x8] sm:$0xff] %vm56, %v135
    // Predicated region
    $region22: #{tpu_custom_call.1} parent=1 // pred_check
      _
    $region23: #{tpu_custom_call.1} parent=1 // pred_check_branch
      %141 = sbr.rel (0) target = $region25
    $region24: #{tpu_custom_call.1} parent=1 // pred_region
      %s143 = ssub.s32 256, 256
      %144 = vsyncadd [#allocation4], %s143
      %s145 = sshll.u32 [#allocation7], 4
      %s146 = int_to_ptr.vmem [resolvable:$true] %s145
      %151 = dma.vmem_to_hbm [thread:$0]  %s146, 256, %s3, [#allocation4], 128, 128, 8
    $region25: #{tpu_custom_call.1} parent=1 // pred_fallthru
      _
    // Predicated region
    $region26: #{tpu_custom_call.1} parent=1 // pred_check
      _
    $region27: #{tpu_custom_call.1} parent=1 // pred_check_branch
      %153 = sbr.rel (0) target = $region29
    $region28: #{tpu_custom_call.1} parent=1 // pred_region
      %154 = dma.done [#allocation4], 256
    $region29: #{tpu_custom_call.1} parent=1 // pred_fallthru
      _
    %155 = vsyncpa [#allocation3], 1
    %156 = vsyncpa [#allocation6], 1
    %157 = vsyncpa [#allocation4], 1

</llo_original>
